<compile_context>
chip_gen: v6e
topology: v6e:2x2x1
jax: 0.10.0
libtpu: 0.0.40
codegen_flags: <defaults>
</compile_context>

<pallas_src>
import jax
import jax.numpy as jnp
import numpy as np
from jax.experimental import pallas as pl
from jax.experimental.pallas import tpu as pltpu

EPS = 1e-6
NEG_SLOPE = 0.01  # default slope for both nn.LeakyReLU() and VNLeakyReLU


def _round_up(x, m):
    return (x + m - 1) // m * m


def _gv_perceptron_kernel(sca_ref, vec_ref,
                          wv1_ref, wv2_ref, wsn_ref, wss_ref,
                          wg_ref, bg_ref, wd_ref,
                          out_s_ref, out_v_ref):
    # Shapes (all lane-dense, TM on lanes):
    #   sca_ref : (S_in, TM)
    #   vec_ref : (3*V_in, TM)    rows ordered  t*V_in + c   (coordinate-major)
    #   wv1_ref : (3*H, 3*V_in)   = kron(I3, Wv1)
    #   wv2_ref : (3*Vo, 3*H)     = kron(I3, Wv2)
    #   wd_ref  : (3*Vo, 3*Vo)    = kron(I3, Wd)
    #   wsn_ref : (S_out, H), wss_ref : (S_out, S_in)
    #   wg_ref  : (Vo, S_out), bg_ref : (Vo, 1)
    H = wv1_ref.shape[0] // 3
    Vo = wv2_ref.shape[0] // 3

    x_all = vec_ref[...]                                              # (3V_in, TM)

    # VNLinear #1 (lin_vector): one MXU push for all 3 coordinates.
    vi_all = jnp.dot(wv1_ref[...], x_all,
                     preferred_element_type=jnp.float32)              # (3H, TM)
    vi0 = vi_all[0 * H:1 * H, :]
    vi1 = vi_all[1 * H:2 * H, :]
    vi2 = vi_all[2 * H:3 * H, :]

    # torch.norm(feat_vector_inter, p=2, dim=-1): L2 over the 3 coordinates.
    norm = jnp.sqrt(vi0 * vi0 + vi1 * vi1 + vi2 * vi2)                # (H, TM)

    # lin_scalar on cat([norm, scalar], -1), bias=False (split into two matmuls).
    out_s = (jnp.dot(wsn_ref[...], norm, preferred_element_type=jnp.float32)
             + jnp.dot(wss_ref[...], sca_ref[...],
                       preferred_element_type=jnp.float32))           # (S_out, TM)

    # VNLinear #2 (lin_vector2), again one push for all 3 coordinates.
    ov_all = jnp.dot(wv2_ref[...], vi_all,
                     preferred_element_type=jnp.float32)              # (3Vo, TM)

    # Scalar->vector gating (uses pre-activation out_s, as in GVLinear).
    gate = jax.nn.sigmoid(
        jnp.dot(wg_ref[...], out_s, preferred_element_type=jnp.float32)
        + bg_ref[...])                                                # (Vo, TM)
    gate3 = jnp.concatenate([gate, gate, gate], axis=0)               # (3Vo, TM)
    ov_g = gate3 * ov_all

    # VNLeakyReLU direction map: one push for all 3 coordinates.
    d_all = jnp.dot(wd_ref[...], ov_g,
                    preferred_element_type=jnp.float32)               # (3Vo, TM)

    x0 = ov_g[0 * Vo:1 * Vo, :]
    x1 = ov_g[1 * Vo:2 * Vo, :]
    x2 = ov_g[2 * Vo:3 * Vo, :]
    d0 = d_all[0 * Vo:1 * Vo, :]
    d1 = d_all[1 * Vo:2 * Vo, :]
    d2 = d_all[2 * Vo:3 * Vo, :]

    dotp = x0 * d0 + x1 * d1 + x2 * d2                                # (Vo, TM)
    dns = d0 * d0 + d1 * d1 + d2 * d2
    coef = dotp * pl.reciprocal(dns + EPS, approx=True)               # EUP slot
    keep = dotp >= 0

    def act(x_t, d_t):
        refl = x_t - coef * d_t
        return NEG_SLOPE * x_t + (1.0 - NEG_SLOPE) * jnp.where(keep, x_t, refl)

    out_v_ref[...] = jnp.concatenate([act(x0, d0), act(x1, d1), act(x2, d2)],
                                     axis=0)                          # (3Vo, TM)

    # LeakyReLU on the scalar branch.
    out_s_ref[...] = jnp.where(out_s >= 0, out_s, NEG_SLOPE * out_s)


def gv_perceptron_vn(sca, vec, params, *, tile_m=512):
    """sca: [B, N, S_in] f32; vec: [B, N, V_in, 3] f32 (PyTorch layout).

    params are in PyTorch nn.Linear orientation (out_features, in_features):
      (w_v1 (H,V_in), w_v2 (V_out,H), w_s (S_out, H+S_in),
       w_g (V_out,S_out), b_g (V_out,), w_d (V_out,V_out))
    """
    w_v1, w_v2, w_s, w_g, b_g, w_d = params
    B, N, S_in = sca.shape
    V_in = vec.shape[2]
    H = w_v1.shape[0]
    S_out = w_s.shape[0]
    V_out = w_v2.shape[0]
    M = B * N

    # Tile along the lane axis: large tiles (>=128, default 512) amortize the
    # per-grid-step overhead; pad M up to a multiple of the tile.
    tm = tile_m if M >= tile_m else _round_up(M, 128)
    tm = _round_up(tm, 128)
    Mp = _round_up(M, tm)

    f32 = jnp.float32
    sca2 = sca.reshape(M, S_in).astype(f32)
    vec2 = vec.reshape(M, V_in, 3).astype(f32)
    if Mp != M:
        sca2 = jnp.pad(sca2, ((0, Mp - M), (0, 0)))
        vec2 = jnp.pad(vec2, ((0, Mp - M), (0, 0), (0, 0)))

    # Lane-dense kernel layout: features on sublanes, rows on lanes.
    scaT = sca2.T                                                     # (S_in, Mp)
    vecT = jnp.transpose(vec2, (2, 1, 0)).reshape(3 * V_in, Mp)       # (3V_in, Mp)

    # Tiny block-diagonal weights fold the 3 coordinates into one matmul each.
    eye3 = jnp.eye(3, dtype=f32)
    wv1_blk = jnp.kron(eye3, w_v1.astype(f32))                        # (3H, 3V_in)
    wv2_blk = jnp.kron(eye3, w_v2.astype(f32))                        # (3Vo, 3H)
    wd_blk = jnp.kron(eye3, w_d.astype(f32))                          # (3Vo, 3Vo)
    wsn = w_s[:, :H].astype(f32)                                      # (S_out, H)
    wss = w_s[:, H:].astype(f32)                                      # (S_out, S_in)
    wg = w_g.astype(f32)                                              # (Vo, S_out)
    bg = b_g.astype(f32).reshape(V_out, 1)                            # (Vo, 1)

    def _full(shape):
        n = len(shape)
        return pl.BlockSpec(shape, lambda i: (0,) * n)

    out_sT, out_vT = pl.pallas_call(
        _gv_perceptron_kernel,
        out_shape=(jax.ShapeDtypeStruct((S_out, Mp), f32),
                   jax.ShapeDtypeStruct((3 * V_out, Mp), f32)),
        grid=(Mp // tm,),
        in_specs=[
            pl.BlockSpec((S_in, tm), lambda i: (0, i)),
            pl.BlockSpec((3 * V_in, tm), lambda i: (0, i)),
            _full(wv1_blk.shape), _full(wv2_blk.shape),
            _full(wsn.shape), _full(wss.shape),
            _full(wg.shape), _full(bg.shape), _full(wd_blk.shape),
        ],
        out_specs=(pl.BlockSpec((S_out, tm), lambda i: (0, i)),
                   pl.BlockSpec((3 * V_out, tm), lambda i: (0, i))),
        compiler_params=pltpu.CompilerParams(dimension_semantics=("parallel",)),
    )(scaT, vecT, wv1_blk, wv2_blk, wsn, wss, wg, bg, wd_blk)

    out_s = out_sT[:, :M].T.reshape(B, N, S_out)
    out_v = jnp.transpose(out_vT.reshape(3, V_out, Mp)[:, :, :M],
                          (2, 1, 0)).reshape(B, N, V_out, 3)
    return out_s, out_v


def init_params(key, in_scalar, in_vector, out_scalar, out_vector):
    """Deterministic synthetic parameters in PyTorch (out, in) orientation."""
    dim_hid = max(in_vector, out_vector)
    ks = jax.random.split(key, 6)

    def uni(k, shape, fan_in):
        b = 1.0 / np.sqrt(fan_in)
        return jax.random.uniform(k, shape, jnp.float32, -b, b)

    w_v1 = uni(ks[0], (dim_hid, in_vector), in_vector)                    # lin_vector
    w_v2 = uni(ks[1], (out_vector, dim_hid), dim_hid)                     # lin_vector2
    w_s = uni(ks[2], (out_scalar, in_scalar + dim_hid), in_scalar + dim_hid)  # lin_scalar
    w_g = uni(ks[3], (out_vector, out_scalar), out_scalar)                # gates
    b_g = uni(ks[4], (out_vector,), out_scalar)
    w_d = uni(ks[5], (out_vector, out_vector), out_vector)                # map_to_dir
    return (w_v1, w_v2, w_s, w_g, b_g, w_d)


def reference(sca, vec, params):
    """Pure-JAX reference mirroring the PyTorch forward (for validation)."""
    w_v1, w_v2, w_s, w_g, b_g, w_d = params
    vi = jnp.einsum('bnvt,hv->bnht', vec, w_v1)                 # [B,N,H,3]
    norm = jnp.sqrt(jnp.sum(vi * vi, axis=-1))                  # [B,N,H]
    cat = jnp.concatenate([norm, sca], axis=-1)
    out_s = cat @ w_s.T                                         # [B,N,S_out]
    ov = jnp.einsum('bnht,vh->bnvt', vi, w_v2)                  # [B,N,V_out,3]
    gate = jax.nn.sigmoid(out_s @ w_g.T + b_g)[..., None]
    ov = gate * ov
    d = jnp.einsum('bnvt,wv->bnwt', ov, w_d)
    dot = jnp.sum(ov * d, axis=-1, keepdims=True)
    dns = jnp.sum(d * d, axis=-1, keepdims=True)
    mask = (dot >= 0).astype(jnp.float32)
    vec_out = (NEG_SLOPE * ov
               + (1.0 - NEG_SLOPE) * (mask * ov
                                      + (1.0 - mask) * (ov - dot / (dns + EPS) * d)))
    sca_out = jnp.where(out_s >= 0, out_s, NEG_SLOPE * out_s)
    return sca_out, vec_out


if __name__ == "__main__":
    in_scalar, in_vector, out_scalar, out_vector = 16, 8, 16, 8
    key = jax.random.PRNGKey(0)
    k_sca, k_vec, k_par, k_sca2, k_vec2 = jax.random.split(key, 5)
    params = init_params(k_par, in_scalar, in_vector, out_scalar, out_vector)

    # Case 1: small shapes, single grid step (M padded 16 -> 128).
    B, N = 2, 8
    sca = jax.random.normal(k_sca, (B, N, in_scalar), jnp.float32)
    vec = jax.random.normal(k_vec, (B, N, in_vector, 3), jnp.float32)
    out_s, out_v = gv_perceptron_vn(sca, vec, params)
    jax.block_until_ready((out_s, out_v))
    ref_s, ref_v = reference(sca, vec, params)
    np.testing.assert_allclose(np.asarray(out_s), np.asarray(ref_s), atol=2e-3, rtol=2e-3)
    np.testing.assert_allclose(np.asarray(out_v), np.asarray(ref_v), atol=2e-3, rtol=2e-3)

    # Case 2: multi-step grid with M padding (M = 600 -> 640, 5 tiles of 128).
    B2, N2 = 2, 300
    sca_b = jax.random.normal(k_sca2, (B2, N2, in_scalar), jnp.float32)
    vec_b = jax.random.normal(k_vec2, (B2, N2, in_vector, 3), jnp.float32)
    out_s_b, out_v_b = gv_perceptron_vn(sca_b, vec_b, params, tile_m=128)
    jax.block_until_ready((out_s_b, out_v_b))
    ref_s_b, ref_v_b = reference(sca_b, vec_b, params)
    np.testing.assert_allclose(np.asarray(out_s_b), np.asarray(ref_s_b), atol=2e-3, rtol=2e-3)
    np.testing.assert_allclose(np.asarray(out_v_b), np.asarray(ref_v_b), atol=2e-3, rtol=2e-3)

    print("KERNEL_OK")
</pallas_src>

<mosaic_0001>
module attributes {stable_mosaic.version = 11 : i64} {
  func.func @_gv_perceptron_kernel(%arg0: i32, %arg1: memref<16x128xf32, #tpu.memory_space<vmem>>, %arg2: memref<24x128xf32, #tpu.memory_space<vmem>>, %arg3: memref<24x24xf32, #tpu.memory_space<vmem>>, %arg4: memref<24x24xf32, #tpu.memory_space<vmem>>, %arg5: memref<16x8xf32, #tpu.memory_space<vmem>>, %arg6: memref<16x16xf32, #tpu.memory_space<vmem>>, %arg7: memref<8x16xf32, #tpu.memory_space<vmem>>, %arg8: memref<8x1xf32, #tpu.memory_space<vmem>>, %arg9: memref<24x24xf32, #tpu.memory_space<vmem>>, %arg10: memref<16x128xf32, #tpu.memory_space<vmem>>, %arg11: memref<24x128xf32, #tpu.memory_space<vmem>>) attributes {dimension_semantics = [#tpu.dimension_semantics<parallel>], iteration_bounds = array<i64: 1>, scalar_prefetch = 0 : i64, scratch_operands = 0 : i64, tpu.core_type = #tpu.core_type<tc>, window_params = [{transform_indices = @transform_0, window_bounds = array<i64: 16, 128>}, {transform_indices = @transform_1, window_bounds = array<i64: 24, 128>}, {pipeline_mode = #tpu.pipeline_mode<synchronous>, transform_indices = @transform_2, window_bounds = array<i64: 24, 24>}, {pipeline_mode = #tpu.pipeline_mode<synchronous>, transform_indices = @transform_3, window_bounds = array<i64: 24, 24>}, {pipeline_mode = #tpu.pipeline_mode<synchronous>, transform_indices = @transform_4, window_bounds = array<i64: 16, 8>}, {pipeline_mode = #tpu.pipeline_mode<synchronous>, transform_indices = @transform_5, window_bounds = array<i64: 16, 16>}, {pipeline_mode = #tpu.pipeline_mode<synchronous>, transform_indices = @transform_6, window_bounds = array<i64: 8, 16>}, {pipeline_mode = #tpu.pipeline_mode<synchronous>, transform_indices = @transform_7, window_bounds = array<i64: 8, 1>}, {pipeline_mode = #tpu.pipeline_mode<synchronous>, transform_indices = @transform_8, window_bounds = array<i64: 24, 24>}, {transform_indices = @transform_9, window_bounds = array<i64: 16, 128>}, {transform_indices = @transform_10, window_bounds = array<i64: 24, 128>}]} {
    %c0 = arith.constant 0 : index
    %c0_0 = arith.constant 0 : index
    %0 = vector.load %arg2[%c0, %c0_0] : memref<24x128xf32, #tpu.memory_space<vmem>>, vector<24x128xf32>
    %c0_1 = arith.constant 0 : index
    %c0_2 = arith.constant 0 : index
    %1 = vector.load %arg3[%c0_1, %c0_2] : memref<24x24xf32, #tpu.memory_space<vmem>>, vector<24x24xf32>
    %cst = arith.constant dense<0.000000e+00> : vector<24x128xf32>
    %2 = tpu.matmul %1, %0, %cst {dimension_numbers = #tpu.dot_dimension_numbers<[1], [0], [0], [1], [0, 0, 1, 1], [], []>} : vector<24x24xf32>, vector<24x128xf32>, vector<24x128xf32> -> vector<24x128xf32>
    %3 = vector.extract_strided_slice %2 {offsets = [0, 0], sizes = [8, 128], strides = [1, 1]} : vector<24x128xf32> to vector<8x128xf32>
    %4 = vector.extract_strided_slice %2 {offsets = [8, 0], sizes = [8, 128], strides = [1, 1]} : vector<24x128xf32> to vector<8x128xf32>
    %5 = vector.extract_strided_slice %2 {offsets = [16, 0], sizes = [8, 128], strides = [1, 1]} : vector<24x128xf32> to vector<8x128xf32>
    %6 = arith.mulf %3, %3 : vector<8x128xf32>
    %7 = arith.mulf %4, %4 : vector<8x128xf32>
    %8 = arith.addf %6, %7 : vector<8x128xf32>
    %9 = arith.mulf %5, %5 : vector<8x128xf32>
    %10 = arith.addf %8, %9 : vector<8x128xf32>
    %11 = math.sqrt %10 : vector<8x128xf32>
    %c0_3 = arith.constant 0 : index
    %c0_4 = arith.constant 0 : index
    %12 = vector.load %arg5[%c0_3, %c0_4] : memref<16x8xf32, #tpu.memory_space<vmem>>, vector<16x8xf32>
    %cst_5 = arith.constant dense<0.000000e+00> : vector<16x128xf32>
    %13 = tpu.matmul %12, %11, %cst_5 {dimension_numbers = #tpu.dot_dimension_numbers<[1], [0], [0], [1], [0, 0, 1, 1], [], []>} : vector<16x8xf32>, vector<8x128xf32>, vector<16x128xf32> -> vector<16x128xf32>
    %c0_6 = arith.constant 0 : index
    %c0_7 = arith.constant 0 : index
    %14 = vector.load %arg6[%c0_6, %c0_7] : memref<16x16xf32, #tpu.memory_space<vmem>>, vector<16x16xf32>
    %c0_8 = arith.constant 0 : index
    %c0_9 = arith.constant 0 : index
    %15 = vector.load %arg1[%c0_8, %c0_9] : memref<16x128xf32, #tpu.memory_space<vmem>>, vector<16x128xf32>
    %cst_10 = arith.constant dense<0.000000e+00> : vector<16x128xf32>
    %16 = tpu.matmul %14, %15, %cst_10 {dimension_numbers = #tpu.dot_dimension_numbers<[1], [0], [0], [1], [0, 0, 1, 1], [], []>} : vector<16x16xf32>, vector<16x128xf32>, vector<16x128xf32> -> vector<16x128xf32>
    %17 = arith.addf %13, %16 : vector<16x128xf32>
    %c0_11 = arith.constant 0 : index
    %c0_12 = arith.constant 0 : index
    %18 = vector.load %arg4[%c0_11, %c0_12] : memref<24x24xf32, #tpu.memory_space<vmem>>, vector<24x24xf32>
    %cst_13 = arith.constant dense<0.000000e+00> : vector<24x128xf32>
    %19 = tpu.matmul %18, %2, %cst_13 {dimension_numbers = #tpu.dot_dimension_numbers<[1], [0], [0], [1], [0, 0, 1, 1], [], []>} : vector<24x24xf32>, vector<24x128xf32>, vector<24x128xf32> -> vector<24x128xf32>
    %c0_14 = arith.constant 0 : index
    %c0_15 = arith.constant 0 : index
    %20 = vector.load %arg7[%c0_14, %c0_15] : memref<8x16xf32, #tpu.memory_space<vmem>>, vector<8x16xf32>
    %cst_16 = arith.constant dense<0.000000e+00> : vector<8x128xf32>
    %21 = tpu.matmul %20, %17, %cst_16 {dimension_numbers = #tpu.dot_dimension_numbers<[1], [0], [0], [1], [0, 0, 1, 1], [], []>} : vector<8x16xf32>, vector<16x128xf32>, vector<8x128xf32> -> vector<8x128xf32>
    %c0_17 = arith.constant 0 : index
    %c0_18 = arith.constant 0 : index
    %22 = vector.load %arg8[%c0_17, %c0_18] : memref<8x1xf32, #tpu.memory_space<vmem>>, vector<8x1xf32>
    %23 = vector.broadcast %22 : vector<8x1xf32> to vector<8x128xf32>
    %24 = arith.addf %21, %23 : vector<8x128xf32>
    %25 = arith.negf %24 : vector<8x128xf32>
    %26 = math.exp %25 : vector<8x128xf32>
    %cst_19 = arith.constant 1.000000e+00 : f32
    %27 = vector.broadcast %cst_19 : f32 to vector<8x128xf32>
    %28 = arith.addf %27, %26 : vector<8x128xf32>
    %29 = arith.divf %27, %28 : vector<8x128xf32>
    %30 = tpu.concatenate %29, %29, %29 in 0 : vector<8x128xf32>, vector<8x128xf32>, vector<8x128xf32> -> vector<24x128xf32>
    %31 = arith.mulf %30, %19 : vector<24x128xf32>
    %c0_20 = arith.constant 0 : index
    %c0_21 = arith.constant 0 : index
    %32 = vector.load %arg9[%c0_20, %c0_21] : memref<24x24xf32, #tpu.memory_space<vmem>>, vector<24x24xf32>
    %cst_22 = arith.constant dense<0.000000e+00> : vector<24x128xf32>
    %33 = tpu.matmul %32, %31, %cst_22 {dimension_numbers = #tpu.dot_dimension_numbers<[1], [0], [0], [1], [0, 0, 1, 1], [], []>} : vector<24x24xf32>, vector<24x128xf32>, vector<24x128xf32> -> vector<24x128xf32>
    %34 = vector.extract_strided_slice %31 {offsets = [0, 0], sizes = [8, 128], strides = [1, 1]} : vector<24x128xf32> to vector<8x128xf32>
    %35 = vector.extract_strided_slice %31 {offsets = [8, 0], sizes = [8, 128], strides = [1, 1]} : vector<24x128xf32> to vector<8x128xf32>
    %36 = vector.extract_strided_slice %31 {offsets = [16, 0], sizes = [8, 128], strides = [1, 1]} : vector<24x128xf32> to vector<8x128xf32>
    %37 = vector.extract_strided_slice %33 {offsets = [0, 0], sizes = [8, 128], strides = [1, 1]} : vector<24x128xf32> to vector<8x128xf32>
    %38 = vector.extract_strided_slice %33 {offsets = [8, 0], sizes = [8, 128], strides = [1, 1]} : vector<24x128xf32> to vector<8x128xf32>
    %39 = vector.extract_strided_slice %33 {offsets = [16, 0], sizes = [8, 128], strides = [1, 1]} : vector<24x128xf32> to vector<8x128xf32>
    %40 = arith.mulf %34, %37 : vector<8x128xf32>
    %41 = arith.mulf %35, %38 : vector<8x128xf32>
    %42 = arith.addf %40, %41 : vector<8x128xf32>
    %43 = arith.mulf %36, %39 : vector<8x128xf32>
    %44 = arith.addf %42, %43 : vector<8x128xf32>
    %45 = arith.mulf %37, %37 : vector<8x128xf32>
    %46 = arith.mulf %38, %38 : vector<8x128xf32>
    %47 = arith.addf %45, %46 : vector<8x128xf32>
    %48 = arith.mulf %39, %39 : vector<8x128xf32>
    %49 = arith.addf %47, %48 : vector<8x128xf32>
    %cst_23 = arith.constant 9.99999997E-7 : f32
    %50 = vector.broadcast %cst_23 : f32 to vector<8x128xf32>
    %51 = arith.addf %49, %50 : vector<8x128xf32>
    %52 = tpu.reciprocal %51 {approx = true} : vector<8x128xf32> -> vector<8x128xf32>
    %53 = arith.mulf %44, %52 : vector<8x128xf32>
    %cst_24 = arith.constant 0.000000e+00 : f32
    %54 = vector.broadcast %cst_24 : f32 to vector<8x128xf32>
    %55 = arith.cmpf oge, %44, %54 : vector<8x128xf32>
    %56 = arith.mulf %53, %37 : vector<8x128xf32>
    %57 = arith.subf %34, %56 : vector<8x128xf32>
    %cst_25 = arith.constant 0.00999999977 : f32
    %58 = vector.broadcast %cst_25 : f32 to vector<8x128xf32>
    %59 = arith.mulf %58, %34 : vector<8x128xf32>
    %60 = arith.select %55, %34, %57 : vector<8x128xi1>, vector<8x128xf32>
    %cst_26 = arith.constant 9.900000e-01 : f32
    %61 = vector.broadcast %cst_26 : f32 to vector<8x128xf32>
    %62 = arith.mulf %61, %60 : vector<8x128xf32>
    %63 = arith.addf %59, %62 : vector<8x128xf32>
    %64 = arith.mulf %53, %38 : vector<8x128xf32>
    %65 = arith.subf %35, %64 : vector<8x128xf32>
    %cst_27 = arith.constant 0.00999999977 : f32
    %66 = vector.broadcast %cst_27 : f32 to vector<8x128xf32>
    %67 = arith.mulf %66, %35 : vector<8x128xf32>
    %68 = arith.select %55, %35, %65 : vector<8x128xi1>, vector<8x128xf32>
    %cst_28 = arith.constant 9.900000e-01 : f32
    %69 = vector.broadcast %cst_28 : f32 to vector<8x128xf32>
    %70 = arith.mulf %69, %68 : vector<8x128xf32>
    %71 = arith.addf %67, %70 : vector<8x128xf32>
    %72 = arith.mulf %53, %39 : vector<8x128xf32>
    %73 = arith.subf %36, %72 : vector<8x128xf32>
    %cst_29 = arith.constant 0.00999999977 : f32
    %74 = vector.broadcast %cst_29 : f32 to vector<8x128xf32>
    %75 = arith.mulf %74, %36 : vector<8x128xf32>
    %76 = arith.select %55, %36, %73 : vector<8x128xi1>, vector<8x128xf32>
    %cst_30 = arith.constant 9.900000e-01 : f32
    %77 = vector.broadcast %cst_30 : f32 to vector<8x128xf32>
    %78 = arith.mulf %77, %76 : vector<8x128xf32>
    %79 = arith.addf %75, %78 : vector<8x128xf32>
    %80 = tpu.concatenate %63, %71, %79 in 0 : vector<8x128xf32>, vector<8x128xf32>, vector<8x128xf32> -> vector<24x128xf32>
    %c0_31 = arith.constant 0 : index
    %c0_32 = arith.constant 0 : index
    %81 = vector.load %arg11[%c0_31, %c0_32] : memref<24x128xf32, #tpu.memory_space<vmem>>, vector<24x128xf32>
    tpu.vector_store %arg11[%c0_31, %c0_32], %80 {strides = array<i32>} : memref<24x128xf32, #tpu.memory_space<vmem>>, vector<24x128xf32>,
    %cst_33 = arith.constant 0.000000e+00 : f32
    %82 = vector.broadcast %cst_33 : f32 to vector<16x128xf32>
    %83 = arith.cmpf oge, %17, %82 : vector<16x128xf32>
    %cst_34 = arith.constant 0.00999999977 : f32
    %84 = vector.broadcast %cst_34 : f32 to vector<16x128xf32>
    %85 = arith.mulf %84, %17 : vector<16x128xf32>
    %86 = arith.select %83, %17, %85 : vector<16x128xi1>, vector<16x128xf32>
    %c0_35 = arith.constant 0 : index
    %c0_36 = arith.constant 0 : index
    %87 = vector.load %arg10[%c0_35, %c0_36] : memref<16x128xf32, #tpu.memory_space<vmem>>, vector<16x128xf32>
    tpu.vector_store %arg10[%c0_35, %c0_36], %86 {strides = array<i32>} : memref<16x128xf32, #tpu.memory_space<vmem>>, vector<16x128xf32>,
    return
  }
  func.func @transform_0(%arg0: i32) -> (i32, i32) {
    %c0_i32 = arith.constant 0 : i32
    %c0_i32_0 = arith.constant 0 : i32
    return %c0_i32, %arg0 : i32, i32
  }
  func.func @transform_1(%arg0: i32) -> (i32, i32) {
    %c0_i32 = arith.constant 0 : i32
    %c0_i32_0 = arith.constant 0 : i32
    return %c0_i32, %arg0 : i32, i32
  }
  func.func @transform_2(%arg0: i32) -> (i32, i32) {
    %c0_i32 = arith.constant 0 : i32
    %c0_i32_0 = arith.constant 0 : i32
    %c0_i32_1 = arith.constant 0 : i32
    return %c0_i32, %c0_i32_0 : i32, i32
  }
  func.func @transform_3(%arg0: i32) -> (i32, i32) {
    %c0_i32 = arith.constant 0 : i32
    %c0_i32_0 = arith.constant 0 : i32
    %c0_i32_1 = arith.constant 0 : i32
    return %c0_i32, %c0_i32_0 : i32, i32
  }
  func.func @transform_4(%arg0: i32) -> (i32, i32) {
    %c0_i32 = arith.constant 0 : i32
    %c0_i32_0 = arith.constant 0 : i32
    %c0_i32_1 = arith.constant 0 : i32
    return %c0_i32, %c0_i32_0 : i32, i32
  }
  func.func @transform_5(%arg0: i32) -> (i32, i32) {
    %c0_i32 = arith.constant 0 : i32
    %c0_i32_0 = arith.constant 0 : i32
    %c0_i32_1 = arith.constant 0 : i32
    return %c0_i32, %c0_i32_0 : i32, i32
  }
  func.func @transform_6(%arg0: i32) -> (i32, i32) {
    %c0_i32 = arith.constant 0 : i32
    %c0_i32_0 = arith.constant 0 : i32
    %c0_i32_1 = arith.constant 0 : i32
    return %c0_i32, %c0_i32_0 : i32, i32
  }
  func.func @transform_7(%arg0: i32) -> (i32, i32) {
    %c0_i32 = arith.constant 0 : i32
    %c0_i32_0 = arith.constant 0 : i32
    %c0_i32_1 = arith.constant 0 : i32
    return %c0_i32, %c0_i32_0 : i32, i32
  }
  func.func @transform_8(%arg0: i32) -> (i32, i32) {
    %c0_i32 = arith.constant 0 : i32
    %c0_i32_0 = arith.constant 0 : i32
    %c0_i32_1 = arith.constant 0 : i32
    return %c0_i32, %c0_i32_0 : i32, i32
  }
  func.func @transform_9(%arg0: i32) -> (i32, i32) {
    %c0_i32 = arith.constant 0 : i32
    %c0_i32_0 = arith.constant 0 : i32
    return %c0_i32, %arg0 : i32, i32
  }
  func.func @transform_10(%arg0: i32) -> (i32, i32) {
    %c0_i32 = arith.constant 0 : i32
    %c0_i32_0 = arith.constant 0 : i32
    return %c0_i32, %arg0 : i32, i32
  }
}

</mosaic_0001>

<llo_original>
// kernel: tpu_custom_call.1
$region0: #{tpu_custom_call.1}
  #allocation0 [shape = 'u32[]', space=smem, size = 0x4, offset = 0x4, fixed_abs, tag = 'smem constant byte address 0x4 - core index']
  #allocation1 [shape = 'u32[144,128]{1,0:T(1,128)}', space=vmem, size = 0x12000, scoped, tag = 'internal scratch']
  %s0 = inlined_call_operand.hbm [shape: f32[16,128], index: 0, kind: input, shape index: {}]
  %s1 = inlined_call_operand.vmem [shape: f32[24,128], index: 1, kind: input, shape index: {}]
  %s2 = inlined_call_operand.hbm [shape: f32[24,24], index: 2, kind: input, shape index: {}]
  %s3 = inlined_call_operand.hbm [shape: f32[24,24], index: 3, kind: input, shape index: {}]
  %s4 = inlined_call_operand.vmem [shape: f32[16,8], index: 4, kind: input, shape index: {}]
  %s5 = inlined_call_operand.vmem [shape: f32[16,16], index: 5, kind: input, shape index: {}]
  %s6 = inlined_call_operand.hbm [shape: f32[8,16], index: 6, kind: input, shape index: {}]
  %s7 = inlined_call_operand.vmem [shape: f32[8,1], index: 7, kind: input, shape index: {}]
  %s8 = inlined_call_operand.hbm [shape: f32[24,24], index: 8, kind: input, shape index: {}]
  %s9 = inlined_call_operand.hbm [shape: f32[16,128], index: 9, kind: output, shape index: {0}]
  %s10 = inlined_call_operand.hbm [shape: f32[24,128], index: 10, kind: output, shape index: {1}]
  %11 = xla_tuple %s9, %s10
  %s12 = sld [smem:[#allocation0]]
  $region74: #{tpu_custom_call.1} parent=0
    _
  %s14 = ssub.s32 1, %s12
  %s15 = scalar_select 0, %s14, %s12
  $region1: #{tpu_custom_call.1} parent=0
    #allocation2 [shape = 'u8[8192]{0}', space=vmem, size = 0x2000, scoped, tag = 'input window, operand 0, single buffered']
    #allocation3 [shape = 's32[1]{0}', space=sflag, size = 0x4, scoped, tag = 'scoped memory for tpu_custom_call.1']
    #allocation4 [shape = 's32[1]{0}', space=sflag, size = 0x4, scoped, tag = 'scoped memory for tpu_custom_call.1']
    #allocation5 [shape = 'u8[12288]{0}', space=vmem, size = 0x3000, scoped, tag = 'input window, operand 2, single buffered']
    #allocation6 [shape = 's32[1]{0}', space=sflag, size = 0x4, scoped, tag = 'scoped memory for tpu_custom_call.1']
    #allocation7 [shape = 'u8[12288]{0}', space=vmem, size = 0x3000, scoped, tag = 'input window, operand 3, single buffered']
    #allocation8 [shape = 'u8[4096]{0}', space=vmem, size = 0x1000, scoped, tag = 'input window, operand 6, single buffered']
    #allocation9 [shape = 's32[1]{0}', space=sflag, size = 0x4, scoped, tag = 'scoped memory for tpu_custom_call.1']
    #allocation10 [shape = 'u8[12288]{0}', space=vmem, size = 0x3000, scoped, tag = 'input window, operand 8, single buffered']
    #allocation11 [shape = 'u8[8192]{0}', space=vmem, size = 0x2000, scoped, tag = 'output window, operand 0, single buffered']
    #allocation12 [shape = 'u8[12288]{0}', space=vmem, size = 0x3000, scoped, tag = 'output window, operand 1, single buffered']
    #allocation13 [shape = 's32[1]{0}', space=sflag, size = 0x4, scoped, tag = 'scoped memory for tpu_custom_call.1']
    %16 = vsyncpa [#allocation3], 0
    %17 = vsyncpa [#allocation6], 0
    %18 = vsyncpa [#allocation9], 0
    %19 = vsyncpa [#allocation4], 0
    %20 = vsyncpa [#allocation13], 0
    // Predicated region
    $region2: #{tpu_custom_call.1} parent=1 // pred_check
      _
    $region3: #{tpu_custom_call.1} parent=1 // pred_check_branch
      %22 = sbr.rel (0) target = $region5
    $region4: #{tpu_custom_call.1} parent=1 // pred_region
      %s24 = ssub.s32 256, 256
      %25 = vsyncadd [#allocation3], %s24
      %s26 = sshll.u32 [#allocation2], 4
      %s27 = int_to_ptr.vmem [resolvable:$true] %s26
      %32 = dma.hbm_to_vmem [thread:$0]  %s0, 256, %s27, [#allocation3], 128, 128, 8
    $region5: #{tpu_custom_call.1} parent=1 // pred_fallthru
      _
    // Predicated region
    $region6: #{tpu_custom_call.1} parent=1 // pred_check
      _
    $region7: #{tpu_custom_call.1} parent=1 // pred_check_branch
      %34 = sbr.rel (0) target = $region9
    $region8: #{tpu_custom_call.1} parent=1 // pred_region
      _
    $region9: #{tpu_custom_call.1} parent=1 // pred_fallthru
      _
    // Predicated region
    $region10: #{tpu_custom_call.1} parent=1 // pred_check
      _
    $region11: #{tpu_custom_call.1} parent=1 // pred_check_branch
      %36 = sbr.rel (0) target = $region13
    $region12: #{tpu_custom_call.1} parent=1 // pred_region
      %s38 = ssub.s32 384, 384
      %39 = vsyncadd [#allocation6], %s38
      %s40 = sshll.u32 [#allocation5], 4
      %s41 = int_to_ptr.vmem [resolvable:$true] %s40
      %46 = dma.hbm_to_vmem [thread:$0]  %s2, 384, %s41, [#allocation6], 128, 128, 8
    $region13: #{tpu_custom_call.1} parent=1 // pred_fallthru
      _
    // Predicated region
    $region14: #{tpu_custom_call.1} parent=1 // pred_check
      _
    $region15: #{tpu_custom_call.1} parent=1 // pred_check_branch
      %48 = sbr.rel (0) target = $region17
    $region16: #{tpu_custom_call.1} parent=1 // pred_region
      %s50 = ssub.s32 384, 384
      %51 = vsyncadd [#allocation6], %s50
      %s52 = sshll.u32 [#allocation7], 4
      %s53 = int_to_ptr.vmem [resolvable:$true] %s52
      %58 = dma.hbm_to_vmem [thread:$0]  %s3, 384, %s53, [#allocation6], 128, 128, 8
    $region17: #{tpu_custom_call.1} parent=1 // pred_fallthru
      _
    // Predicated region
    $region18: #{tpu_custom_call.1} parent=1 // pred_check
      _
    $region19: #{tpu_custom_call.1} parent=1 // pred_check_branch
      %60 = sbr.rel (0) target = $region21
    $region20: #{tpu_custom_call.1} parent=1 // pred_region
      _
    $region21: #{tpu_custom_call.1} parent=1 // pred_fallthru
      _
    // Predicated region
    $region22: #{tpu_custom_call.1} parent=1 // pred_check
      _
    $region23: #{tpu_custom_call.1} parent=1 // pred_check_branch
      %62 = sbr.rel (0) target = $region25
    $region24: #{tpu_custom_call.1} parent=1 // pred_region
      _
    $region25: #{tpu_custom_call.1} parent=1 // pred_fallthru
      _
    // Predicated region
    $region26: #{tpu_custom_call.1} parent=1 // pred_check
      _
    $region27: #{tpu_custom_call.1} parent=1 // pred_check_branch
      %64 = sbr.rel (0) target = $region29
    $region28: #{tpu_custom_call.1} parent=1 // pred_region
      %s66 = ssub.s32 128, 128
      %67 = vsyncadd [#allocation9], %s66
      %s69 = sshll.u32 [#allocation8], 4
      %s70 = int_to_ptr.vmem [resolvable:$true] %s69
      %72 = dma.hbm_to_vmem [thread:$0]  %s6, 128, %s70, [#allocation9]
    $region29: #{tpu_custom_call.1} parent=1 // pred_fallthru
      _
    // Predicated region
    $region30: #{tpu_custom_call.1} parent=1 // pred_check
      _
    $region31: #{tpu_custom_call.1} parent=1 // pred_check_branch
      %74 = sbr.rel (0) target = $region33
    $region32: #{tpu_custom_call.1} parent=1 // pred_region
      _
    $region33: #{tpu_custom_call.1} parent=1 // pred_fallthru
      _
    // Predicated region
    $region34: #{tpu_custom_call.1} parent=1 // pred_check
      _
    $region35: #{tpu_custom_call.1} parent=1 // pred_check_branch
      %76 = sbr.rel (0) target = $region37
    $region36: #{tpu_custom_call.1} parent=1 // pred_region
      %s78 = ssub.s32 384, 384
      %79 = vsyncadd [#allocation9], %s78
      %s80 = sshll.u32 [#allocation10], 4
      %s81 = int_to_ptr.vmem [resolvable:$true] %s80
      %86 = dma.hbm_to_vmem [thread:$0]  %s8, 384, %s81, [#allocation9], 128, 128, 8
    $region37: #{tpu_custom_call.1} parent=1 // pred_fallthru
      _
    // Predicated region
    $region38: #{tpu_custom_call.1} parent=1 // pred_check
      _
    $region39: #{tpu_custom_call.1} parent=1 // pred_check_branch
      %88 = sbr.rel (0) target = $region41
    $region40: #{tpu_custom_call.1} parent=1 // pred_region
      %89 = dma.done [#allocation3], 256
    $region41: #{tpu_custom_call.1} parent=1 // pred_fallthru
      _
    // Predicated region
    $region42: #{tpu_custom_call.1} parent=1 // pred_check
      _
    $region43: #{tpu_custom_call.1} parent=1 // pred_check_branch
      %91 = sbr.rel (0) target = $region45
    $region44: #{tpu_custom_call.1} parent=1 // pred_region
      %92 = dma.done [#allocation6], 384
    $region45: #{tpu_custom_call.1} parent=1 // pred_fallthru
      _
    // Predicated region
    $region46: #{tpu_custom_call.1} parent=1 // pred_check
      _
    $region47: #{tpu_custom_call.1} parent=1 // pred_check_branch
      %94 = sbr.rel (0) target = $region49
    $region48: #{tpu_custom_call.1} parent=1 // pred_region
      %95 = dma.done [#allocation6], 384
    $region49: #{tpu_custom_call.1} parent=1 // pred_fallthru
      _
    // Predicated region
    $region50: #{tpu_custom_call.1} parent=1 // pred_check
      _
    $region51: #{tpu_custom_call.1} parent=1 // pred_check_branch
      %97 = sbr.rel (0) target = $region53
    $region52: #{tpu_custom_call.1} parent=1 // pred_region
      %98 = dma.done [#allocation9], 128
    $region53: #{tpu_custom_call.1} parent=1 // pred_fallthru
      _
    // Predicated region
    $region54: #{tpu_custom_call.1} parent=1 // pred_check
      _
    $region55: #{tpu_custom_call.1} parent=1 // pred_check_branch
      %100 = sbr.rel (0) target = $region57
    $region56: #{tpu_custom_call.1} parent=1 // pred_region
      %101 = dma.done [#allocation9], 384
    $region57: #{tpu_custom_call.1} parent=1 // pred_fallthru
      _
    %v102 = vld [vmem:[%s1] sm:$0xff]
    %v103 = vld [vmem:[%s1 + $0x8] sm:$0xff]
    %v104 = vld [vmem:[%s1 + $0x10] sm:$0xff]
    %v105 = vld [vmem:[#allocation5] sm:$0xff]
    %v106 = vld [vmem:[#allocation5 + $0x8] sm:$0xff]
    %v107 = vld [vmem:[#allocation5 + $0x10] sm:$0xff]
    %vm108 = vcmask 195584
    %v110 = vsel %vm108, %v105, 0
    %v113 = vsel %vm108, %v106, 0
    %v116 = vsel %vm108, %v107, 0
    %118 = vmatprep.subr.mxu0 0.0
    %119 = vmatpush1.msra.mxu0 0.0
    %120 = vmatprep.subr.mxu0 0.0
    %121 = vmatpush1.msra.mxu0 0.0
    %122 = vmatprep.subr.mxu0 0.0
    %123 = vmatpush1.msra.mxu0 0.0
    %124 = vmatprep.subr.mxu0 0.0
    %125 = vmatpush1.msra.mxu0 0.0
    %126 = vmatprep.subr.mxu0 0.0
    %127 = vmatpush1.msra.mxu0 0.0
    %128 = vmatprep.subr.mxu0 0.0
    %129 = vmatpush1.msra.mxu0 0.0
    %130 = vmatprep.subr.mxu0 0.0
    %131 = vmatpush1.msra.mxu0 0.0
    %132 = vmatprep.subr.mxu0 0.0
    %133 = vmatpush1.msra.mxu0 0.0
    %134 = vmatprep.subr.mxu0 0.0
    %135 = vmatpush1.msra.mxu0 0.0
    %136 = vmatprep.subr.mxu0 0.0
    %137 = vmatpush1.msra.mxu0 0.0
    %138 = vmatprep.subr.mxu0 0.0
    %139 = vmatpush1.msra.mxu0 0.0
    %140 = vmatprep.subr.mxu0 0.0
    %141 = vmatpush1.msra.mxu0 0.0
    %142 = vmatprep.subr.mxu0 0.0
    %143 = vmatpush1.msra.mxu0 0.0
    %144 = vmatprep.subr.mxu0 0.0
    %145 = vmatpush1.msra.mxu0 %v104
    %146 = vmatprep.subr.mxu0 0.0
    %147 = vmatpush1.msra.mxu0 %v103
    %148 = vmatprep.subr.mxu0 0.0
    %149 = vmatpush1.msra.mxu0 %v102
    %150 = vmatprep.subr.mxu0 0.0
    %151 = vmatpush2.msra.mxu0 0.0
    %152 = vmatprep.subr.mxu0 0.0
    %153 = vmatpush2.msra.mxu0 0.0
    %154 = vmatprep.subr.mxu0 0.0
    %155 = vmatpush2.msra.mxu0 0.0
    %156 = vmatprep.subr.mxu0 0.0
    %157 = vmatpush2.msra.mxu0 0.0
    %158 = vmatprep.subr.mxu0 0.0
    %159 = vmatpush2.msra.mxu0 0.0
    %160 = vmatprep.subr.mxu0 0.0
    %161 = vmatpush2.msra.mxu0 0.0
    %162 = vmatprep.subr.mxu0 0.0
    %163 = vmatpush2.msra.mxu0 0.0
    %164 = vmatprep.subr.mxu0 0.0
    %165 = vmatpush2.msra.mxu0 0.0
    %166 = vmatprep.subr.mxu0 0.0
    %167 = vmatpush2.msra.mxu0 0.0
    %168 = vmatprep.subr.mxu0 0.0
    %169 = vmatpush2.msra.mxu0 0.0
    %170 = vmatprep.subr.mxu0 0.0
    %171 = vmatpush2.msra.mxu0 0.0
    %172 = vmatprep.subr.mxu0 0.0
    %173 = vmatpush2.msra.mxu0 0.0
    %174 = vmatprep.subr.mxu0 0.0
    %175 = vmatpush2.msra.mxu0 0.0
    %176 = vmatprep.subr.mxu0 0.0
    %177 = vmatpush2.msra.mxu0 0.0
    %178 = vmatprep.subr.mxu0 0.0
    %179 = vmatpush2.msra.mxu0 0.0
    %180 = vmatprep.subr.mxu0 0.0
    %181 = vmatpush2.msra.mxu0 0.0
    %182 = vmatprep.mubr.f32.mxu0 0.0
    %183 = vmatmul.mubr.f32.gmra.mxu0 %v110
    %v184 = vpop.f32.mrf.mxu0
    %v185 = vadd.f32 0.0, %v184
    %v186 = vpop.f32.mrf.mxu0
    %187 = vmatprep.mubr.f32.mxu0 0.0
    %188 = vmatmul.mubr.f32.gmra.mxu0 %v113
    %v189 = vpop.f32.mrf.mxu0
    %v190 = vadd.f32 0.0, %v189
    %v191 = vpop.f32.mrf.mxu0
    %192 = vmatprep.mubr.f32.mxu0 0.0
    %193 = vmatmul.mubr.f32.gmra.mxu0 %v116
    %v194 = vpop.f32.mrf.mxu0
    %v195 = vadd.f32 0.0, %v194
    %v196 = vpop.f32.mrf.mxu0
    %197 = vdwg.mxu0
    %v198 = vmul.f32 %v185, %v185
    %v199 = vmul.f32 %v190, %v190
    %v200 = vadd.f32 %v198, %v199
    %v201 = vmul.f32 %v195, %v195
    %v202 = vadd.f32 %v200, %v201
    %v203 = vrsqrt.pop %v202
    %v204 = vmul.f32 %v202, %v203
    %vm205 = vcmp.eq.f32.partialorder %v202, inf
    %v206 = vsel %vm205, %v202, %v204
    %vm207 = vcmp.eq.f32.partialorder %v202, 0.0
    %v208 = vand.u32 %v202, 2147483648
    %v209 = vsel %vm207, %v208, %v206
    %v210 = vld [vmem:[%s4] sm:$0xff]
    %v211 = vld [vmem:[%s4 + $0x8] sm:$0xff]
    %v212 = vld [vmem:[%s5] sm:$0xff]
    %v213 = vld [vmem:[%s5 + $0x8] sm:$0xff]
    %v214 = vld [vmem:[#allocation2] sm:$0xff]
    %v215 = vld [vmem:[#allocation2 + $0x8] sm:$0xff]
    %vm216 = vcmask 130048
    %v218 = vsel %vm216, %v212, 0
    %v221 = vsel %vm216, %v213, 0
    %223 = vmatprep.subr.mxu0 0.0
    %224 = vmatpush1.msra.mxu0 0.0
    %225 = vmatprep.subr.mxu0 0.0
    %226 = vmatpush1.msra.mxu0 0.0
    %227 = vmatprep.subr.mxu0 0.0
    %228 = vmatpush1.msra.mxu0 0.0
    %229 = vmatprep.subr.mxu0 0.0
    %230 = vmatpush1.msra.mxu0 0.0
    %231 = vmatprep.subr.mxu0 0.0
    %232 = vmatpush1.msra.mxu0 0.0
    %233 = vmatprep.subr.mxu0 0.0
    %234 = vmatpush1.msra.mxu0 0.0
    %235 = vmatprep.subr.mxu0 0.0
    %236 = vmatpush1.msra.mxu0 0.0
    %237 = vmatprep.subr.mxu0 0.0
    %238 = vmatpush1.msra.mxu0 0.0
    %239 = vmatprep.subr.mxu0 0.0
    %240 = vmatpush1.msra.mxu0 0.0
    %241 = vmatprep.subr.mxu0 0.0
    %242 = vmatpush1.msra.mxu0 0.0
    %243 = vmatprep.subr.mxu0 0.0
    %244 = vmatpush1.msra.mxu0 0.0
    %245 = vmatprep.subr.mxu0 0.0
    %246 = vmatpush1.msra.mxu0 0.0
    %247 = vmatprep.subr.mxu0 0.0
    %248 = vmatpush1.msra.mxu0 0.0
    %249 = vmatprep.subr.mxu0 0.0
    %250 = vmatpush1.msra.mxu0 0.0
    %251 = vmatprep.subr.mxu0 0.0
    %252 = vmatpush1.msra.mxu0 %v215
    %253 = vmatprep.subr.mxu0 0.0
    %254 = vmatpush1.msra.mxu0 %v214
    %255 = vmatprep.subr.mxu0 0.0
    %256 = vmatpush2.msra.mxu0 0.0
    %257 = vmatprep.subr.mxu0 0.0
    %258 = vmatpush2.msra.mxu0 0.0
    %259 = vmatprep.subr.mxu0 0.0
    %260 = vmatpush2.msra.mxu0 0.0
    %261 = vmatprep.subr.mxu0 0.0
    %262 = vmatpush2.msra.mxu0 0.0
    %263 = vmatprep.subr.mxu0 0.0
    %264 = vmatpush2.msra.mxu0 0.0
    %265 = vmatprep.subr.mxu0 0.0
    %266 = vmatpush2.msra.mxu0 0.0
    %267 = vmatprep.subr.mxu0 0.0
    %268 = vmatpush2.msra.mxu0 0.0
    %269 = vmatprep.subr.mxu0 0.0
    %270 = vmatpush2.msra.mxu0 0.0
    %271 = vmatprep.subr.mxu0 0.0
    %272 = vmatpush2.msra.mxu0 0.0
    %273 = vmatprep.subr.mxu0 0.0
    %274 = vmatpush2.msra.mxu0 0.0
    %275 = vmatprep.subr.mxu0 0.0
    %276 = vmatpush2.msra.mxu0 0.0
    %277 = vmatprep.subr.mxu0 0.0
    %278 = vmatpush2.msra.mxu0 0.0
    %279 = vmatprep.subr.mxu0 0.0
    %280 = vmatpush2.msra.mxu0 0.0
    %281 = vmatprep.subr.mxu0 0.0
    %282 = vmatpush2.msra.mxu0 0.0
    %283 = vmatprep.subr.mxu0 0.0
    %284 = vmatpush2.msra.mxu0 0.0
    %285 = vmatprep.subr.mxu0 0.0
    %286 = vmatpush2.msra.mxu0 0.0
    %287 = vmatprep.mubr.f32.mxu0 0.0
    %288 = vmatmul.mubr.f32.gmra.mxu0 %v218
    %v289 = vpop.f32.mrf.mxu0
    %v290 = vadd.f32 0.0, %v289
    %v291 = vpop.f32.mrf.mxu0
    %292 = vmatprep.mubr.f32.mxu0 0.0
    %293 = vmatmul.mubr.f32.gmra.mxu0 %v221
    %v294 = vpop.f32.mrf.mxu0
    %v295 = vadd.f32 0.0, %v294
    %v296 = vpop.f32.mrf.mxu0
    %297 = vdwg.mxu0
    %vm298 = vcmask 64512
    %v300 = vsel %vm298, %v210, 0
    %v303 = vsel %vm298, %v211, 0
    %305 = vmatprep.subr.mxu0 0.0
    %306 = vmatpush1.msra.mxu0 0.0
    %307 = vmatprep.subr.mxu0 0.0
    %308 = vmatpush1.msra.mxu0 0.0
    %309 = vmatprep.subr.mxu0 0.0
    %310 = vmatpush1.msra.mxu0 0.0
    %311 = vmatprep.subr.mxu0 0.0
    %312 = vmatpush1.msra.mxu0 0.0
    %313 = vmatprep.subr.mxu0 0.0
    %314 = vmatpush1.msra.mxu0 0.0
    %315 = vmatprep.subr.mxu0 0.0
    %316 = vmatpush1.msra.mxu0 0.0
    %317 = vmatprep.subr.mxu0 0.0
    %318 = vmatpush1.msra.mxu0 0.0
    %319 = vmatprep.subr.mxu0 0.0
    %320 = vmatpush1.msra.mxu0 0.0
    %321 = vmatprep.subr.mxu0 0.0
    %322 = vmatpush1.msra.mxu0 0.0
    %323 = vmatprep.subr.mxu0 0.0
    %324 = vmatpush1.msra.mxu0 0.0
    %325 = vmatprep.subr.mxu0 0.0
    %326 = vmatpush1.msra.mxu0 0.0
    %327 = vmatprep.subr.mxu0 0.0
    %328 = vmatpush1.msra.mxu0 0.0
    %329 = vmatprep.subr.mxu0 0.0
    %330 = vmatpush1.msra.mxu0 0.0
    %331 = vmatprep.subr.mxu0 0.0
    %332 = vmatpush1.msra.mxu0 0.0
    %333 = vmatprep.subr.mxu0 0.0
    %334 = vmatpush1.msra.mxu0 0.0
    %335 = vmatprep.subr.mxu0 0.0
    %336 = vmatpush1.msra.mxu0 %v209
    %337 = vmatprep.subr.mxu0 0.0
    %338 = vmatpush2.msra.mxu0 0.0
    %339 = vmatprep.subr.mxu0 0.0
    %340 = vmatpush2.msra.mxu0 0.0
    %341 = vmatprep.subr.mxu0 0.0
    %342 = vmatpush2.msra.mxu0 0.0
    %343 = vmatprep.subr.mxu0 0.0
    %344 = vmatpush2.msra.mxu0 0.0
    %345 = vmatprep.subr.mxu0 0.0
    %346 = vmatpush2.msra.mxu0 0.0
    %347 = vmatprep.subr.mxu0 0.0
    %348 = vmatpush2.msra.mxu0 0.0
    %349 = vmatprep.subr.mxu0 0.0
    %350 = vmatpush2.msra.mxu0 0.0
    %351 = vmatprep.subr.mxu0 0.0
    %352 = vmatpush2.msra.mxu0 0.0
    %353 = vmatprep.subr.mxu0 0.0
    %354 = vmatpush2.msra.mxu0 0.0
    %355 = vmatprep.subr.mxu0 0.0
    %356 = vmatpush2.msra.mxu0 0.0
    %357 = vmatprep.subr.mxu0 0.0
    %358 = vmatpush2.msra.mxu0 0.0
    %359 = vmatprep.subr.mxu0 0.0
    %360 = vmatpush2.msra.mxu0 0.0
    %361 = vmatprep.subr.mxu0 0.0
    %362 = vmatpush2.msra.mxu0 0.0
    %363 = vmatprep.subr.mxu0 0.0
    %364 = vmatpush2.msra.mxu0 0.0
    %365 = vmatprep.subr.mxu0 0.0
    %366 = vmatpush2.msra.mxu0 0.0
    %367 = vmatprep.subr.mxu0 0.0
    %368 = vmatpush2.msra.mxu0 0.0
    %369 = vmatprep.mubr.f32.mxu0 0.0
    %370 = vmatmul.mubr.f32.gmra.mxu0 %v300
    %v371 = vpop.f32.mrf.mxu0
    %v372 = vadd.f32 %v290, %v371
    %v373 = vpop.f32.mrf.mxu0
    %374 = vmatprep.mubr.f32.mxu0 0.0
    %375 = vmatmul.mubr.f32.gmra.mxu0 %v303
    %v376 = vpop.f32.mrf.mxu0
    %v377 = vadd.f32 %v295, %v376
    %v378 = vpop.f32.mrf.mxu0
    %379 = vdwg.mxu0
    %v380 = vld [vmem:[#allocation7] sm:$0xff]
    %v381 = vld [vmem:[#allocation7 + $0x8] sm:$0xff]
    %v382 = vld [vmem:[#allocation7 + $0x10] sm:$0xff]
    %v384 = vsel %vm108, %v380, 0
    %v387 = vsel %vm108, %v381, 0
    %v390 = vsel %vm108, %v382, 0
    %392 = vmatprep.subr.mxu0 0.0
    %393 = vmatpush1.msra.mxu0 0.0
    %394 = vmatprep.subr.mxu0 0.0
    %395 = vmatpush1.msra.mxu0 0.0
    %396 = vmatprep.subr.mxu0 0.0
    %397 = vmatpush1.msra.mxu0 0.0
    %398 = vmatprep.subr.mxu0 0.0
    %399 = vmatpush1.msra.mxu0 0.0
    %400 = vmatprep.subr.mxu0 0.0
    %401 = vmatpush1.msra.mxu0 0.0
    %402 = vmatprep.subr.mxu0 0.0
    %403 = vmatpush1.msra.mxu0 0.0
    %404 = vmatprep.subr.mxu0 0.0
    %405 = vmatpush1.msra.mxu0 0.0
    %406 = vmatprep.subr.mxu0 0.0
    %407 = vmatpush1.msra.mxu0 0.0
    %408 = vmatprep.subr.mxu0 0.0
    %409 = vmatpush1.msra.mxu0 0.0
    %410 = vmatprep.subr.mxu0 0.0
    %411 = vmatpush1.msra.mxu0 0.0
    %412 = vmatprep.subr.mxu0 0.0
    %413 = vmatpush1.msra.mxu0 0.0
    %414 = vmatprep.subr.mxu0 0.0
    %415 = vmatpush1.msra.mxu0 0.0
    %416 = vmatprep.subr.mxu0 0.0
    %417 = vmatpush1.msra.mxu0 0.0
    %418 = vmatprep.subr.mxu0 0.0
    %419 = vmatpush1.msra.mxu0 %v195
    %420 = vmatprep.subr.mxu0 0.0
    %421 = vmatpush1.msra.mxu0 %v190
    %422 = vmatprep.subr.mxu0 0.0
    %423 = vmatpush1.msra.mxu0 %v185
    %424 = vmatprep.subr.mxu0 0.0
    %425 = vmatpush2.msra.mxu0 0.0
    %426 = vmatprep.subr.mxu0 0.0
    %427 = vmatpush2.msra.mxu0 0.0
    %428 = vmatprep.subr.mxu0 0.0
    %429 = vmatpush2.msra.mxu0 0.0
    %430 = vmatprep.subr.mxu0 0.0
    %431 = vmatpush2.msra.mxu0 0.0
    %432 = vmatprep.subr.mxu0 0.0
    %433 = vmatpush2.msra.mxu0 0.0
    %434 = vmatprep.subr.mxu0 0.0
    %435 = vmatpush2.msra.mxu0 0.0
    %436 = vmatprep.subr.mxu0 0.0
    %437 = vmatpush2.msra.mxu0 0.0
    %438 = vmatprep.subr.mxu0 0.0
    %439 = vmatpush2.msra.mxu0 0.0
    %440 = vmatprep.subr.mxu0 0.0
    %441 = vmatpush2.msra.mxu0 0.0
    %442 = vmatprep.subr.mxu0 0.0
    %443 = vmatpush2.msra.mxu0 0.0
    %444 = vmatprep.subr.mxu0 0.0
    %445 = vmatpush2.msra.mxu0 0.0
    %446 = vmatprep.subr.mxu0 0.0
    %447 = vmatpush2.msra.mxu0 0.0
    %448 = vmatprep.subr.mxu0 0.0
    %449 = vmatpush2.msra.mxu0 0.0
    %450 = vmatprep.subr.mxu0 0.0
    %451 = vmatpush2.msra.mxu0 0.0
    %452 = vmatprep.subr.mxu0 0.0
    %453 = vmatpush2.msra.mxu0 0.0
    %454 = vmatprep.subr.mxu0 0.0
    %455 = vmatpush2.msra.mxu0 0.0
    %456 = vmatprep.mubr.f32.mxu0 0.0
    %457 = vmatmul.mubr.f32.gmra.mxu0 %v384
    %v458 = vpop.f32.mrf.mxu0
    %v459 = vadd.f32 0.0, %v458
    %v460 = vpop.f32.mrf.mxu0
    %461 = vmatprep.mubr.f32.mxu0 0.0
    %462 = vmatmul.mubr.f32.gmra.mxu0 %v387
    %v463 = vpop.f32.mrf.mxu0
    %v464 = vadd.f32 0.0, %v463
    %v465 = vpop.f32.mrf.mxu0
    %466 = vmatprep.mubr.f32.mxu0 0.0
    %467 = vmatmul.mubr.f32.gmra.mxu0 %v390
    %v468 = vpop.f32.mrf.mxu0
    %v469 = vadd.f32 0.0, %v468
    %v470 = vpop.f32.mrf.mxu0
    %471 = vdwg.mxu0
    %v472 = vld [vmem:[#allocation8] sm:$0xff]
    %v473 = vld [vmem:[%s7] sm:$0xff]
    %475 = vset.pattern.permute.xlu0 0
    %476 = vperm.xlu0 %475, %v473
    %v477 = vpop.permute.xlu0 %476
    %v480 = vsel %vm216, %v472, 0
    %482 = vmatprep.subr.mxu0 0.0
    %483 = vmatpush1.msra.mxu0 0.0
    %484 = vmatprep.subr.mxu0 0.0
    %485 = vmatpush1.msra.mxu0 0.0
    %486 = vmatprep.subr.mxu0 0.0
    %487 = vmatpush1.msra.mxu0 0.0
    %488 = vmatprep.subr.mxu0 0.0
    %489 = vmatpush1.msra.mxu0 0.0
    %490 = vmatprep.subr.mxu0 0.0
    %491 = vmatpush1.msra.mxu0 0.0
    %492 = vmatprep.subr.mxu0 0.0
    %493 = vmatpush1.msra.mxu0 0.0
    %494 = vmatprep.subr.mxu0 0.0
    %495 = vmatpush1.msra.mxu0 0.0
    %496 = vmatprep.subr.mxu0 0.0
    %497 = vmatpush1.msra.mxu0 0.0
    %498 = vmatprep.subr.mxu0 0.0
    %499 = vmatpush1.msra.mxu0 0.0
    %500 = vmatprep.subr.mxu0 0.0
    %501 = vmatpush1.msra.mxu0 0.0
    %502 = vmatprep.subr.mxu0 0.0
    %503 = vmatpush1.msra.mxu0 0.0
    %504 = vmatprep.subr.mxu0 0.0
    %505 = vmatpush1.msra.mxu0 0.0
    %506 = vmatprep.subr.mxu0 0.0
    %507 = vmatpush1.msra.mxu0 0.0
    %508 = vmatprep.subr.mxu0 0.0
    %509 = vmatpush1.msra.mxu0 0.0
    %510 = vmatprep.subr.mxu0 0.0
    %511 = vmatpush1.msra.mxu0 %v377
    %512 = vmatprep.subr.mxu0 0.0
    %513 = vmatpush1.msra.mxu0 %v372
    %514 = vmatprep.subr.mxu0 0.0
    %515 = vmatpush2.msra.mxu0 0.0
    %516 = vmatprep.subr.mxu0 0.0
    %517 = vmatpush2.msra.mxu0 0.0
    %518 = vmatprep.subr.mxu0 0.0
    %519 = vmatpush2.msra.mxu0 0.0
    %520 = vmatprep.subr.mxu0 0.0
    %521 = vmatpush2.msra.mxu0 0.0
    %522 = vmatprep.subr.mxu0 0.0
    %523 = vmatpush2.msra.mxu0 0.0
    %524 = vmatprep.subr.mxu0 0.0
    %525 = vmatpush2.msra.mxu0 0.0
    %526 = vmatprep.subr.mxu0 0.0
    %527 = vmatpush2.msra.mxu0 0.0
    %528 = vmatprep.subr.mxu0 0.0
    %529 = vmatpush2.msra.mxu0 0.0
    %530 = vmatprep.subr.mxu0 0.0
    %531 = vmatpush2.msra.mxu0 0.0
    %532 = vmatprep.subr.mxu0 0.0
    %533 = vmatpush2.msra.mxu0 0.0
    %534 = vmatprep.subr.mxu0 0.0
    %535 = vmatpush2.msra.mxu0 0.0
    %536 = vmatprep.subr.mxu0 0.0
    %537 = vmatpush2.msra.mxu0 0.0
    %538 = vmatprep.subr.mxu0 0.0
    %539 = vmatpush2.msra.mxu0 0.0
    %540 = vmatprep.subr.mxu0 0.0
    %541 = vmatpush2.msra.mxu0 0.0
    %542 = vmatprep.subr.mxu0 0.0
    %543 = vmatpush2.msra.mxu0 0.0
    %544 = vmatprep.subr.mxu0 0.0
    %545 = vmatpush2.msra.mxu0 0.0
    %546 = vmatprep.mubr.f32.mxu0 0.0
    %547 = vmatmul.mubr.f32.gmra.mxu0 %v480
    %v548 = vpop.f32.mrf.mxu0
    %v549 = vadd.f32 %v477, %v548
    %v550 = vpop.f32.mrf.mxu0
    %551 = vdwg.mxu0
    %v552 = vxor.u32 %v549, 2147483648
    %v553 = vmul.f32 %v552, 1.442695
    %v554 = vpow.pop %v553
    %v555 = vadd.f32 %v554, 1.0
    %v556 = vrcp.pop %v555
    %v557 = vmul.f32 1.0, %v556
    %v558 = vmul.f32 %v557, %v459
    %v559 = vmul.f32 %v557, %v464
    %v560 = vmul.f32 %v557, %v469
    %v561 = vld [vmem:[#allocation10] sm:$0xff]
    %v562 = vld [vmem:[#allocation10 + $0x8] sm:$0xff]
    %v563 = vld [vmem:[#allocation10 + $0x10] sm:$0xff]
    %v565 = vsel %vm108, %v561, 0
    %v568 = vsel %vm108, %v562, 0
    %v571 = vsel %vm108, %v563, 0
    %573 = vmatprep.subr.mxu0 0.0
    %574 = vmatpush1.msra.mxu0 0.0
    %575 = vmatprep.subr.mxu0 0.0
    %576 = vmatpush1.msra.mxu0 0.0
    %577 = vmatprep.subr.mxu0 0.0
    %578 = vmatpush1.msra.mxu0 0.0
    %579 = vmatprep.subr.mxu0 0.0
    %580 = vmatpush1.msra.mxu0 0.0
    %581 = vmatprep.subr.mxu0 0.0
    %582 = vmatpush1.msra.mxu0 0.0
    %583 = vmatprep.subr.mxu0 0.0
    %584 = vmatpush1.msra.mxu0 0.0
    %585 = vmatprep.subr.mxu0 0.0
    %586 = vmatpush1.msra.mxu0 0.0
    %587 = vmatprep.subr.mxu0 0.0
    %588 = vmatpush1.msra.mxu0 0.0
    %589 = vmatprep.subr.mxu0 0.0
    %590 = vmatpush1.msra.mxu0 0.0
    %591 = vmatprep.subr.mxu0 0.0
    %592 = vmatpush1.msra.mxu0 0.0
    %593 = vmatprep.subr.mxu0 0.0
    %594 = vmatpush1.msra.mxu0 0.0
    %595 = vmatprep.subr.mxu0 0.0
    %596 = vmatpush1.msra.mxu0 0.0
    %597 = vmatprep.subr.mxu0 0.0
    %598 = vmatpush1.msra.mxu0 0.0
    %599 = vmatprep.subr.mxu0 0.0
    %600 = vmatpush1.msra.mxu0 %v560
    %601 = vmatprep.subr.mxu0 0.0
    %602 = vmatpush1.msra.mxu0 %v559
    %603 = vmatprep.subr.mxu0 0.0
    %604 = vmatpush1.msra.mxu0 %v558
    %605 = vmatprep.subr.mxu0 0.0
    %606 = vmatpush2.msra.mxu0 0.0
    %607 = vmatprep.subr.mxu0 0.0
    %608 = vmatpush2.msra.mxu0 0.0
    %609 = vmatprep.subr.mxu0 0.0
    %610 = vmatpush2.msra.mxu0 0.0
    %611 = vmatprep.subr.mxu0 0.0
    %612 = vmatpush2.msra.mxu0 0.0
    %613 = vmatprep.subr.mxu0 0.0
    %614 = vmatpush2.msra.mxu0 0.0
    %615 = vmatprep.subr.mxu0 0.0
    %616 = vmatpush2.msra.mxu0 0.0
    %617 = vmatprep.subr.mxu0 0.0
    %618 = vmatpush2.msra.mxu0 0.0
    %619 = vmatprep.subr.mxu0 0.0
    %620 = vmatpush2.msra.mxu0 0.0
    %621 = vmatprep.subr.mxu0 0.0
    %622 = vmatpush2.msra.mxu0 0.0
    %623 = vmatprep.subr.mxu0 0.0
    %624 = vmatpush2.msra.mxu0 0.0
    %625 = vmatprep.subr.mxu0 0.0
    %626 = vmatpush2.msra.mxu0 0.0
    %627 = vmatprep.subr.mxu0 0.0
    %628 = vmatpush2.msra.mxu0 0.0
    %629 = vmatprep.subr.mxu0 0.0
    %630 = vmatpush2.msra.mxu0 0.0
    %631 = vmatprep.subr.mxu0 0.0
    %632 = vmatpush2.msra.mxu0 0.0
    %633 = vmatprep.subr.mxu0 0.0
    %634 = vmatpush2.msra.mxu0 0.0
    %635 = vmatprep.subr.mxu0 0.0
    %636 = vmatpush2.msra.mxu0 0.0
    %637 = vmatprep.mubr.f32.mxu0 0.0
    %638 = vmatmul.mubr.f32.gmra.mxu0 %v565
    %v639 = vpop.f32.mrf.mxu0
    %v640 = vadd.f32 0.0, %v639
    %v641 = vpop.f32.mrf.mxu0
    %642 = vmatprep.mubr.f32.mxu0 0.0
    %643 = vmatmul.mubr.f32.gmra.mxu0 %v568
    %v644 = vpop.f32.mrf.mxu0
    %v645 = vadd.f32 0.0, %v644
    %v646 = vpop.f32.mrf.mxu0
    %647 = vmatprep.mubr.f32.mxu0 0.0
    %648 = vmatmul.mubr.f32.gmra.mxu0 %v571
    %v649 = vpop.f32.mrf.mxu0
    %v650 = vadd.f32 0.0, %v649
    %v651 = vpop.f32.mrf.mxu0
    %652 = vdwg.mxu0
    %v653 = vmul.f32 %v558, %v640
    %v654 = vmul.f32 %v559, %v645
    %v655 = vadd.f32 %v653, %v654
    %v656 = vmul.f32 %v560, %v650
    %v657 = vadd.f32 %v655, %v656
    %v658 = vmul.f32 %v640, %v640
    %v659 = vmul.f32 %v645, %v645
    %v660 = vadd.f32 %v658, %v659
    %v661 = vmul.f32 %v650, %v650
    %v662 = vadd.f32 %v660, %v661
    %v663 = vadd.f32 %v662, 1e-06
    %v664 = vrcp.pop %v663
    %v665 = vmul.f32 %v657, %v664
    %vm666 = vcmp.ge.f32.partialorder %v657, 0.0
    %v667 = vmul.f32 %v665, %v640
    %v668 = vsub.f32 %v558, %v667
    %v669 = vmul.f32 %v558, 0.01
    %v670 = vsel %vm666, %v558, %v668
    %v671 = vmul.f32 %v670, 0.99
    %v672 = vadd.f32 %v669, %v671
    %v673 = vmul.f32 %v665, %v645
    %v674 = vsub.f32 %v559, %v673
    %v675 = vmul.f32 %v559, 0.01
    %v676 = vsel %vm666, %v559, %v674
    %v677 = vmul.f32 %v676, 0.99
    %v678 = vadd.f32 %v675, %v677
    %v679 = vmul.f32 %v665, %v650
    %v680 = vsub.f32 %v560, %v679
    %v681 = vmul.f32 %v560, 0.01
    %v682 = vsel %vm666, %v560, %v680
    %v683 = vmul.f32 %v682, 0.99
    %v684 = vadd.f32 %v681, %v683
    %685 = vst [vmem:[#allocation12] sm:$0xff] %v672
    %686 = vst [vmem:[#allocation12 + $0x8] sm:$0xff] %v678
    %687 = vst [vmem:[#allocation12 + $0x10] sm:$0xff] %v684
    %vm688 = vcmp.ge.f32.partialorder %v372, 0.0
    %vm689 = vcmp.ge.f32.partialorder %v377, 0.0
    %v690 = vmul.f32 %v372, 0.01
    %v691 = vmul.f32 %v377, 0.01
    %v692 = vsel %vm688, %v372, %v690
    %v693 = vsel %vm689, %v377, %v691
    %694 = vst [vmem:[#allocation11] sm:$0xff] %v692
    %695 = vst [vmem:[#allocation11 + $0x8] sm:$0xff] %v693
    // Predicated region
    $region58: #{tpu_custom_call.1} parent=1 // pred_check
      _
    $region59: #{tpu_custom_call.1} parent=1 // pred_check_branch
      %697 = sbr.rel (0) target = $region61
    $region60: #{tpu_custom_call.1} parent=1 // pred_region
      %s699 = ssub.s32 256, 256
      %700 = vsyncadd [#allocation4], %s699
      %s701 = sshll.u32 [#allocation11], 4
      %s702 = int_to_ptr.vmem [resolvable:$true] %s701
      %707 = dma.vmem_to_hbm [thread:$0]  %s702, 256, %s9, [#allocation4], 128, 128, 8
    $region61: #{tpu_custom_call.1} parent=1 // pred_fallthru
      _
    // Predicated region
    $region62: #{tpu_custom_call.1} parent=1 // pred_check
      _
    $region63: #{tpu_custom_call.1} parent=1 // pred_check_branch
      %709 = sbr.rel (0) target = $region65
    $region64: #{tpu_custom_call.1} parent=1 // pred_region
      %s711 = ssub.s32 384, 384
      %712 = vsyncadd [#allocation13], %s711
      %s713 = sshll.u32 [#allocation12], 4
      %s714 = int_to_ptr.vmem [resolvable:$true] %s713
      %719 = dma.vmem_to_hbm [thread:$0]  %s714, 384, %s10, [#allocation13], 128, 128, 8
    $region65: #{tpu_custom_call.1} parent=1 // pred_fallthru
      _
    // Predicated region
    $region66: #{tpu_custom_call.1} parent=1 // pred_check
      _
    $region67: #{tpu_custom_call.1} parent=1 // pred_check_branch
      %721 = sbr.rel (0) target = $region69
    $region68: #{tpu_custom_call.1} parent=1 // pred_region
      %722 = dma.done [#allocation4], 256
    $region69: #{tpu_custom_call.1} parent=1 // pred_fallthru
      _
    // Predicated region
    $region70: #{tpu_custom_call.1} parent=1 // pred_check
      _
    $region71: #{tpu_custom_call.1} parent=1 // pred_check_branch
      %724 = sbr.rel (0) target = $region73
    $region72: #{tpu_custom_call.1} parent=1 // pred_region
      %725 = dma.done [#allocation13], 384
    $region73: #{tpu_custom_call.1} parent=1 // pred_fallthru
      _
    %726 = vsyncpa [#allocation3], 1
    %727 = vsyncpa [#allocation6], 1
    %728 = vsyncpa [#allocation9], 1
    %729 = vsyncpa [#allocation4], 1
    %730 = vsyncpa [#allocation13], 1

</llo_original>
